<compile_context>
chip_gen: v7x
topology: tpu7x:2x2x1
jax: 0.10.0
libtpu: 0.0.40
codegen_flags: <defaults>
</compile_context>

<pallas_src>
import functools

import jax
import jax.numpy as jnp
import numpy as np
from jax.experimental import pallas as pl
from jax.experimental.pallas import tpu as pltpu


# ----------------------------- configuration -----------------------------
N_TOKENS = 24
D_EMBED = 32
D_PROJ = 32
CUTOFFS = [8, 16]
DIV_VAL = 2

CUTOFF_ENDS = [0] + CUTOFFS + [N_TOKENS]          # [0, 8, 16, 24]
N_LAYERS = len(CUTOFF_ENDS) - 1                   # 3
N_CLUSTERS = N_LAYERS - 1                         # 2
SHORTLIST = CUTOFF_ENDS[1]                        # 8
HEAD_SIZE = SHORTLIST + N_CLUSTERS                # 10

# Lane layout of the packed logits slab:
#   [ head (shortlist + cluster cols) | tail_1 | tail_2 | -inf padding ]
LAYER_SIZES = [HEAD_SIZE] + [CUTOFF_ENDS[i + 1] - CUTOFF_ENDS[i]
                             for i in range(1, N_LAYERS)]
LANE_OFFSETS = [int(sum(LAYER_SIZES[:i])) for i in range(N_LAYERS)]
V_TOTAL = int(sum(LAYER_SIZES))                   # 26
V_PAD = 128                                       # pad vocab axis to one lane tile

# Plain Python float: the kernel must NOT close over jnp arrays
# (that was the "captures constants [f32[]]" trace error).
_NEG = -1.0e30


# ------------------------------- kernel ----------------------------------
def _adaptive_logsoftmax_nll_kernel(hidden_ref, target_ref, w_ref, b_ref, cid_ref,
                                    nll_ref, *, shared_max: bool):
    h = hidden_ref[...]                              # (block_n, d_proj) bf16/f32
    tgt = target_ref[...]                            # (block_n, 1) int32
    cid = cid_ref[...]                               # (1, V_PAD) int32; -1 = padding

    # Single MXU pass: all cluster logits at once, f32 accumulation, f32 bias.
    # Bias padding lanes are -1e30, so padding logits are ~-inf.
    logits = jnp.dot(h, w_ref[...], preferred_element_type=jnp.float32) + b_ref[...]
    n = logits.shape[0]

    if shared_max:
        # One per-row max over the whole 128-lane slab (padding is ~-inf).
        gmax = jnp.max(logits, axis=1, keepdims=True)
        e = jnp.exp(logits - gmax)                   # padding lanes -> exp(-huge) = 0
        maxes = [gmax] * N_LAYERS
    else:
        # Fallback: exact per-cluster maxes (bit-matches per-cluster softmax,
        # immune to cross-cluster exp underflow).
        maxes = [jnp.max(jnp.where(cid == i, logits, _NEG), axis=1, keepdims=True)
                 for i in range(N_LAYERS)]
        maxvec = jnp.full_like(logits, _NEG)
        for i in range(N_LAYERS):
            maxvec = jnp.where(cid == i, maxes[i], maxvec)
        # Padding lanes give exp(0)=1 but are excluded from every masked sum.
        e = jnp.exp(logits - maxvec)

    # Per-cluster exp sums via cheap (1, V_PAD) broadcast masks (cid == i).
    lses = []
    for i in range(N_LAYERS):
        s = jnp.sum(jnp.where(cid == i, e, 0.0), axis=1, keepdims=True)
        lses.append(maxes[i] + jnp.log(s))

    # Route each row to its cluster: packed lane of the target logit, the head
    # cluster-column lane (HEAD_SIZE - i, matching head_logprob_i[:, -i] of the
    # reference) and the logsumexp of the row's tail cluster.  All (n, 1) ops.
    tgt_lane = jnp.full_like(tgt, -1)
    clus_lane = jnp.full_like(tgt, -1)
    tail_lse = jnp.zeros((n, 1), jnp.float32)
    for i in range(N_LAYERS):
        left, right = CUTOFF_ENDS[i], CUTOFF_ENDS[i + 1]
        m = (tgt >= left) & (tgt < right)
        tgt_lane = jnp.where(m, tgt - left + LANE_OFFSETS[i], tgt_lane)
        if i > 0:
            clus_lane = jnp.where(m, HEAD_SIZE - i, clus_lane)
            tail_lse = jnp.where(m, lses[i], tail_lse)
    in_any = (tgt >= CUTOFF_ENDS[0]) & (tgt < CUTOFF_ENDS[-1])

    # Merged iota-mask gather: the target lane and the head cluster-column lane
    # are disjoint per row (shortlist rows: clus_lane = -1 never matches; tail
    # rows: tgt_lane >= HEAD_SIZE > clus_lane), so one select + one lane
    # reduction yields g_target + g_cluster in a single pass.
    lane = jax.lax.broadcasted_iota(jnp.int32, (n, V_PAD), 1)
    gmask = (lane == tgt_lane) | (lane == clus_lane)
    g = jnp.sum(jnp.where(gmask, logits, 0.0), axis=1, keepdims=True)

    # shortlist: nll = lse_head - logit[target]                (tail_lse = 0)
    # tail i   : nll = (lse_head - logit[cluster_col]) + (lse_tail_i - logit[tgt])
    nll = jnp.where(in_any, lses[0] + tail_lse - g, 0.0)
    nll_ref[...] = nll.astype(nll_ref.dtype)


# ------------------------------- wrapper ----------------------------------
def fold_params(params, dtype=jnp.float32):
    """Fold proj_i into the output weight: (h @ p) @ w.T == h @ (p @ w.T)."""
    folded = []
    for (w, b, p) in params:
        wp = jnp.dot(p.astype(jnp.float32), w.astype(jnp.float32).T)  # (d_proj, vocab_i)
        folded.append((wp.astype(dtype), b.reshape(1, -1).astype(jnp.float32)))
    return folded


def _round_up(x, m):
    return (x + m - 1) // m * m


def adaptive_logsoftmax_nll(hidden, target, params, *, block_n=2048, use_bf16=True,
                            shared_max=True):
    """hidden: (..., d_proj), target: (...) int -> nll: target.shape, f32."""
    assert hidden.shape[-1] == D_PROJ
    assert hidden.shape[:-1] == target.shape
    target_shape = target.shape

    compute_dtype = jnp.bfloat16 if use_bf16 else jnp.float32
    folded = fold_params(params, compute_dtype)

    # Pack every cluster along the vocab axis into one lane-dense slab.
    w_all = jnp.concatenate([wp for wp, _ in folded], axis=1)       # (d_proj, V_TOTAL)
    b_all = jnp.concatenate([b for _, b in folded], axis=1)         # (1, V_TOTAL)
    w_all = jnp.pad(w_all, ((0, 0), (0, V_PAD - V_TOTAL))).astype(compute_dtype)
    # Padding bias lanes with -1e30 makes padding logits ~-inf so the kernel
    # needs no explicit padding guard before exp/max/sum.
    b_all = jnp.pad(b_all.astype(jnp.float32), ((0, 0), (0, V_PAD - V_TOTAL)),
                    constant_values=_NEG)

    # Resident per-lane cluster-id row: 0 = head, 1/2 = tails, -1 = padding.
    cid_np = np.full((1, V_PAD), -1, np.int32)
    for i in range(N_LAYERS):
        cid_np[0, LANE_OFFSETS[i]:LANE_OFFSETS[i] + LAYER_SIZES[i]] = i
    cid = jnp.asarray(cid_np)

    h2 = hidden.reshape(-1, D_PROJ).astype(compute_dtype)
    t2 = target.reshape(-1, 1).astype(jnp.int32)
    n = h2.shape[0]

    # Row tile: multiple of 16 (bf16 sublane packing).  Default 2048 amortizes
    # per-step grid overhead while keeping implicit f32 temporaries (<10 MiB)
    # inside the scoped-VMEM budget on v5e/v6e/v7x.
    min_blk = 16
    block_n = max(min_blk,
                  _round_up(min(int(block_n), _round_up(n, min_blk)), min_blk))
    n_pad = _round_up(n, block_n)
    if n_pad != n:
        h2 = jnp.pad(h2, ((0, n_pad - n), (0, 0)))
        t2 = jnp.pad(t2, ((0, n_pad - n), (0, 0)))
    grid = (n_pad // block_n,)

    itemsize = jnp.dtype(compute_dtype).itemsize
    cost = pl.CostEstimate(
        flops=int(2 * n_pad * D_PROJ * V_PAD),
        transcendentals=int(n_pad * V_PAD),
        bytes_accessed=int(n_pad * (D_PROJ * itemsize + 4 + 4)
                           + w_all.size * itemsize + (b_all.size + cid.size) * 4),
    )

    kernel = functools.partial(_adaptive_logsoftmax_nll_kernel, shared_max=shared_max)

    nll = pl.pallas_call(
        kernel,
        out_shape=jax.ShapeDtypeStruct((n_pad, 1), jnp.float32),
        grid_spec=pltpu.PrefetchScalarGridSpec(
            num_scalar_prefetch=0,
            grid=grid,
            in_specs=[
                pl.BlockSpec((block_n, D_PROJ), lambda i: (i, 0)),  # hidden rows (tiled)
                pl.BlockSpec((block_n, 1), lambda i: (i, 0)),       # targets    (tiled)
                pl.BlockSpec((D_PROJ, V_PAD), lambda i: (0, 0)),    # packed weights (resident)
                pl.BlockSpec((1, V_PAD), lambda i: (0, 0)),         # packed bias    (resident)
                pl.BlockSpec((1, V_PAD), lambda i: (0, 0)),         # cluster ids    (resident)
            ],
            out_specs=pl.BlockSpec((block_n, 1), lambda i: (i, 0)),
        ),
        compiler_params=pltpu.CompilerParams(
            dimension_semantics=("parallel",),          # megacore split on v7x
            vmem_limit_bytes=32 * 1024 * 1024),
        cost_estimate=cost,
    )(h2, t2, w_all, b_all, cid)

    return nll[:n, 0].reshape(target_shape)


# -------------------------- deterministic params ---------------------------
def init_params(key):
    """List of (weight (V_i, d_emb_i), bias (V_i,), proj (d_proj, d_emb_i)),
    with the head weight/bias already concatenated with cluster_proj (as the
    torch forward does)."""
    keys = jax.random.split(key, 16)
    ki = iter(range(16))

    params = []
    for i in range(N_LAYERS):
        left, right = CUTOFF_ENDS[i], CUTOFF_ENDS[i + 1]
        d_emb_i = D_EMBED // (DIV_VAL ** i)
        v_i = right - left
        bound = 1.0 / np.sqrt(d_emb_i)
        w = jax.random.uniform(keys[next(ki)], (v_i, d_emb_i),
                               minval=-bound, maxval=bound, dtype=jnp.float32)
        b = jax.random.uniform(keys[next(ki)], (v_i,),
                               minval=-bound, maxval=bound, dtype=jnp.float32)
        proj = jax.random.normal(keys[next(ki)], (D_PROJ, d_emb_i),
                                 dtype=jnp.float32)
        if i == 0:
            cb = 1.0 / np.sqrt(D_EMBED)
            cw = jax.random.uniform(keys[next(ki)], (N_CLUSTERS, D_EMBED),
                                    minval=-cb, maxval=cb, dtype=jnp.float32)
            cbias = jax.random.uniform(keys[next(ki)], (N_CLUSTERS,),
                                       minval=-cb, maxval=cb, dtype=jnp.float32)
            w = jnp.concatenate([w, cw], axis=0)        # (head_size, d_embed)
            b = jnp.concatenate([b, cbias], axis=0)     # (head_size,)
        params.append((w, b, proj))
    return params


# ----------------------------- pure-JAX reference ---------------------------
def reference_nll(hidden, target, params, *, compute_dtype=jnp.float32):
    """Reference with the same proj-folding; compute_dtype=bfloat16 reproduces
    the kernel's input precision for a tight parity check."""
    folded = fold_params(params, compute_dtype)
    h2 = hidden.reshape(-1, D_PROJ).astype(compute_dtype).astype(jnp.float32)
    t2 = target.reshape(-1).astype(jnp.int32)

    def logits_for(i):
        wp, b = folded[i]
        return h2 @ wp.astype(jnp.float32) + b

    head_lp = jax.nn.log_softmax(logits_for(0), axis=1)

    nll = jnp.zeros_like(t2, dtype=jnp.float32)
    idx0 = jnp.clip(t2, 0, HEAD_SIZE - 1)[:, None]
    g0 = jnp.take_along_axis(head_lp, idx0, axis=1)[:, 0]
    m0 = (t2 >= 0) & (t2 < CUTOFF_ENDS[1])
    nll = jnp.where(m0, -g0, nll)
    for i in range(1, N_LAYERS):
        left, right = CUTOFF_ENDS[i], CUTOFF_ENDS[i + 1]
        lp = jax.nn.log_softmax(logits_for(i), axis=1)
        ti = jnp.clip(t2 - left, 0, right - left - 1)[:, None]
        g = jnp.take_along_axis(lp, ti, axis=1)[:, 0]
        full = head_lp[:, HEAD_SIZE - i] + g
        m = (t2 >= left) & (t2 < right)
        nll = jnp.where(m, -full, nll)
    return nll.reshape(target.shape)


# --------------------------------- main -------------------------------------
if __name__ == "__main__":
    key = jax.random.PRNGKey(0)
    k_h, k_t, k_p = jax.random.split(key, 3)

    batch, seq = 4, 8
    hidden = jax.random.normal(k_h, (batch, seq, D_PROJ), dtype=jnp.float32)
    target = jax.random.randint(k_t, (batch, seq), 0, N_TOKENS, dtype=jnp.int32)
    params = init_params(k_p)

    # Small block_n so the toy shape still exercises the multi-step row grid.
    nll = adaptive_logsoftmax_nll(hidden, target, params, block_n=16)
    nll = jax.block_until_ready(nll)
    assert nll.shape == target.shape

    # Tight parity check against a reference using the same bf16-folded weights.
    ref_bf16 = jax.block_until_ready(
        reference_nll(hidden, target, params, compute_dtype=jnp.bfloat16))
    assert np.allclose(np.asarray(nll), np.asarray(ref_bf16), atol=2e-3, rtol=2e-3)

    # Fallback exact per-cluster-max path must agree too.
    nll_exact = jax.block_until_ready(
        adaptive_logsoftmax_nll(hidden, target, params, block_n=16, shared_max=False))
    assert np.allclose(np.asarray(nll_exact), np.asarray(ref_bf16), atol=2e-3, rtol=2e-3)

    # Loose semantic sanity check against the exact f32 reference
    # (bf16 matmul inputs introduce ~1e-2-level absolute error).
    ref_f32 = jax.block_until_ready(reference_nll(hidden, target, params))
    assert np.allclose(np.asarray(nll), np.asarray(ref_f32), atol=0.25, rtol=0.05)

    # TODO(synk): mode='generate' branch (debug prints + data-dependent-width
    # concatenated exp-prob output) is not implemented in-kernel.
    print("KERNEL_OK")
</pallas_src>

<mosaic_0001>
module attributes {stable_mosaic.version = 11 : i64} {
  func.func @_adaptive_logsoftmax_nll_kernel(%arg0: i32, %arg1: memref<16x32xbf16, #tpu.memory_space<vmem>>, %arg2: memref<16x1xi32, #tpu.memory_space<vmem>>, %arg3: memref<32x128xbf16, #tpu.memory_space<vmem>>, %arg4: memref<1x128xf32, #tpu.memory_space<vmem>>, %arg5: memref<1x128xi32, #tpu.memory_space<vmem>>, %arg6: memref<16x1xf32, #tpu.memory_space<vmem>>) attributes {dimension_semantics = [#tpu.dimension_semantics<parallel>], iteration_bounds = array<i64: 2>, scalar_prefetch = 0 : i64, scratch_operands = 0 : i64, tpu.core_type = #tpu.core_type<tc>, window_params = [{transform_indices = @transform_0, window_bounds = array<i64: 16, 32>}, {transform_indices = @transform_1, window_bounds = array<i64: 16, 1>}, {pipeline_mode = #tpu.pipeline_mode<synchronous>, transform_indices = @transform_2, window_bounds = array<i64: 32, 128>}, {pipeline_mode = #tpu.pipeline_mode<synchronous>, transform_indices = @transform_3, window_bounds = array<i64: 1, 128>}, {pipeline_mode = #tpu.pipeline_mode<synchronous>, transform_indices = @transform_4, window_bounds = array<i64: 1, 128>}, {transform_indices = @transform_5, window_bounds = array<i64: 16, 1>}]} {
    %c0 = arith.constant 0 : index
    %c0_0 = arith.constant 0 : index
    %0 = vector.load %arg1[%c0, %c0_0] : memref<16x32xbf16, #tpu.memory_space<vmem>>, vector<16x32xbf16>
    %c0_1 = arith.constant 0 : index
    %c0_2 = arith.constant 0 : index
    %1 = vector.load %arg2[%c0_1, %c0_2] : memref<16x1xi32, #tpu.memory_space<vmem>>, vector<16x1xi32>
    %c0_3 = arith.constant 0 : index
    %c0_4 = arith.constant 0 : index
    %2 = vector.load %arg5[%c0_3, %c0_4] : memref<1x128xi32, #tpu.memory_space<vmem>>, vector<1x128xi32>
    %c0_5 = arith.constant 0 : index
    %c0_6 = arith.constant 0 : index
    %3 = vector.load %arg3[%c0_5, %c0_6] : memref<32x128xbf16, #tpu.memory_space<vmem>>, vector<32x128xbf16>
    %cst = arith.constant dense<0.000000e+00> : vector<16x128xf32>
    %4 = tpu.matmul %0, %3, %cst {dimension_numbers = #tpu.dot_dimension_numbers<[1], [0], [0], [1], [0, 0, 1, 1], [], []>} : vector<16x32xbf16>, vector<32x128xbf16>, vector<16x128xf32> -> vector<16x128xf32>
    %c0_7 = arith.constant 0 : index
    %c0_8 = arith.constant 0 : index
    %5 = vector.load %arg4[%c0_7, %c0_8] : memref<1x128xf32, #tpu.memory_space<vmem>>, vector<1x128xf32>
    %6 = vector.broadcast %5 : vector<1x128xf32> to vector<16x128xf32>
    %7 = arith.addf %4, %6 : vector<16x128xf32>
    %cst_9 = arith.constant dense<0xFF800000> : vector<16xf32>
    %8 = vector.multi_reduction <maximumf>, %7, %cst_9 [1] : vector<16x128xf32> to vector<16xf32>
    %9 = vector.shape_cast %8 : vector<16xf32> to vector<16x1xf32>
    %10 = vector.broadcast %9 : vector<16x1xf32> to vector<16x128xf32>
    %11 = arith.subf %7, %10 : vector<16x128xf32>
    %12 = math.exp %11 : vector<16x128xf32>
    %c0_i32 = arith.constant 0 : i32
    %13 = vector.broadcast %c0_i32 : i32 to vector<1x128xi32>
    %14 = arith.cmpi eq, %2, %13 : vector<1x128xi32>
    %cst_10 = arith.constant 0.000000e+00 : f32
    %15 = vector.shape_cast %14 : vector<1x128xi1> to vector<1x128xi1>
    %16 = vector.broadcast %15 : vector<1x128xi1> to vector<16x128xi1>
    %17 = vector.broadcast %cst_10 : f32 to vector<16x128xf32>
    %18 = arith.select %16, %12, %17 : vector<16x128xi1>, vector<16x128xf32>
    %cst_11 = arith.constant dense<0.000000e+00> : vector<16xf32>
    %19 = vector.multi_reduction <add>, %18, %cst_11 [1] : vector<16x128xf32> to vector<16xf32>
    %20 = vector.shape_cast %19 : vector<16xf32> to vector<16x1xf32>
    %21 = math.log %20 : vector<16x1xf32>
    %22 = arith.addf %9, %21 : vector<16x1xf32>
    %c1_i32 = arith.constant 1 : i32
    %23 = vector.broadcast %c1_i32 : i32 to vector<1x128xi32>
    %24 = arith.cmpi eq, %2, %23 : vector<1x128xi32>
    %cst_12 = arith.constant 0.000000e+00 : f32
    %25 = vector.shape_cast %24 : vector<1x128xi1> to vector<1x128xi1>
    %26 = vector.broadcast %25 : vector<1x128xi1> to vector<16x128xi1>
    %27 = vector.broadcast %cst_12 : f32 to vector<16x128xf32>
    %28 = arith.select %26, %12, %27 : vector<16x128xi1>, vector<16x128xf32>
    %cst_13 = arith.constant dense<0.000000e+00> : vector<16xf32>
    %29 = vector.multi_reduction <add>, %28, %cst_13 [1] : vector<16x128xf32> to vector<16xf32>
    %30 = vector.shape_cast %29 : vector<16xf32> to vector<16x1xf32>
    %31 = math.log %30 : vector<16x1xf32>
    %32 = arith.addf %9, %31 : vector<16x1xf32>
    %c2_i32 = arith.constant 2 : i32
    %33 = vector.broadcast %c2_i32 : i32 to vector<1x128xi32>
    %34 = arith.cmpi eq, %2, %33 : vector<1x128xi32>
    %cst_14 = arith.constant 0.000000e+00 : f32
    %35 = vector.shape_cast %34 : vector<1x128xi1> to vector<1x128xi1>
    %36 = vector.broadcast %35 : vector<1x128xi1> to vector<16x128xi1>
    %37 = vector.broadcast %cst_14 : f32 to vector<16x128xf32>
    %38 = arith.select %36, %12, %37 : vector<16x128xi1>, vector<16x128xf32>
    %cst_15 = arith.constant dense<0.000000e+00> : vector<16xf32>
    %39 = vector.multi_reduction <add>, %38, %cst_15 [1] : vector<16x128xf32> to vector<16xf32>
    %40 = vector.shape_cast %39 : vector<16xf32> to vector<16x1xf32>
    %41 = math.log %40 : vector<16x1xf32>
    %42 = arith.addf %9, %41 : vector<16x1xf32>
    %c-1_i32 = arith.constant -1 : i32
    %43 = vector.broadcast %c-1_i32 : i32 to vector<16x1xi32>
    %c-1_i32_16 = arith.constant -1 : i32
    %44 = vector.broadcast %c-1_i32_16 : i32 to vector<16x1xi32>
    %cst_17 = arith.constant 0.000000e+00 : f32
    %45 = vector.broadcast %cst_17 : f32 to vector<16x1xf32>
    %c0_i32_18 = arith.constant 0 : i32
    %46 = vector.broadcast %c0_i32_18 : i32 to vector<16x1xi32>
    %47 = arith.cmpi sge, %1, %46 : vector<16x1xi32>
    %c8_i32 = arith.constant 8 : i32
    %48 = vector.broadcast %c8_i32 : i32 to vector<16x1xi32>
    %49 = arith.cmpi slt, %1, %48 : vector<16x1xi32>
    %50 = arith.andi %47, %49 : vector<16x1xi1>
    %c0_i32_19 = arith.constant 0 : i32
    %51 = vector.broadcast %c0_i32_19 : i32 to vector<16x1xi32>
    %52 = arith.subi %1, %51 : vector<16x1xi32>
    %c0_i32_20 = arith.constant 0 : i32
    %53 = vector.broadcast %c0_i32_20 : i32 to vector<16x1xi32>
    %54 = arith.addi %52, %53 : vector<16x1xi32>
    %55 = arith.select %50, %54, %43 : vector<16x1xi1>, vector<16x1xi32>
    %c8_i32_21 = arith.constant 8 : i32
    %56 = vector.broadcast %c8_i32_21 : i32 to vector<16x1xi32>
    %57 = arith.cmpi sge, %1, %56 : vector<16x1xi32>
    %c16_i32 = arith.constant 16 : i32
    %58 = vector.broadcast %c16_i32 : i32 to vector<16x1xi32>
    %59 = arith.cmpi slt, %1, %58 : vector<16x1xi32>
    %60 = arith.andi %57, %59 : vector<16x1xi1>
    %c8_i32_22 = arith.constant 8 : i32
    %61 = vector.broadcast %c8_i32_22 : i32 to vector<16x1xi32>
    %62 = arith.subi %1, %61 : vector<16x1xi32>
    %c10_i32 = arith.constant 10 : i32
    %63 = vector.broadcast %c10_i32 : i32 to vector<16x1xi32>
    %64 = arith.addi %62, %63 : vector<16x1xi32>
    %65 = arith.select %60, %64, %55 : vector<16x1xi1>, vector<16x1xi32>
    %c9_i32 = arith.constant 9 : i32
    %66 = vector.broadcast %c9_i32 : i32 to vector<16x1xi32>
    %67 = arith.select %60, %66, %44 : vector<16x1xi1>, vector<16x1xi32>
    %68 = arith.select %60, %32, %45 : vector<16x1xi1>, vector<16x1xf32>
    %c16_i32_23 = arith.constant 16 : i32
    %69 = vector.broadcast %c16_i32_23 : i32 to vector<16x1xi32>
    %70 = arith.cmpi sge, %1, %69 : vector<16x1xi32>
    %c24_i32 = arith.constant 24 : i32
    %71 = vector.broadcast %c24_i32 : i32 to vector<16x1xi32>
    %72 = arith.cmpi slt, %1, %71 : vector<16x1xi32>
    %73 = arith.andi %70, %72 : vector<16x1xi1>
    %c16_i32_24 = arith.constant 16 : i32
    %74 = vector.broadcast %c16_i32_24 : i32 to vector<16x1xi32>
    %75 = arith.subi %1, %74 : vector<16x1xi32>
    %c18_i32 = arith.constant 18 : i32
    %76 = vector.broadcast %c18_i32 : i32 to vector<16x1xi32>
    %77 = arith.addi %75, %76 : vector<16x1xi32>
    %78 = arith.select %73, %77, %65 : vector<16x1xi1>, vector<16x1xi32>
    %c8_i32_25 = arith.constant 8 : i32
    %79 = vector.broadcast %c8_i32_25 : i32 to vector<16x1xi32>
    %80 = arith.select %73, %79, %67 : vector<16x1xi1>, vector<16x1xi32>
    %81 = arith.select %73, %42, %68 : vector<16x1xi1>, vector<16x1xf32>
    %c0_i32_26 = arith.constant 0 : i32
    %82 = vector.broadcast %c0_i32_26 : i32 to vector<16x1xi32>
    %83 = arith.cmpi sge, %1, %82 : vector<16x1xi32>
    %c24_i32_27 = arith.constant 24 : i32
    %84 = vector.broadcast %c24_i32_27 : i32 to vector<16x1xi32>
    %85 = arith.cmpi slt, %1, %84 : vector<16x1xi32>
    %86 = arith.andi %83, %85 : vector<16x1xi1>
    %87 = tpu.iota {dimensions = array<i32: 1>} : vector<16x128xi32>
    %88 = vector.broadcast %78 : vector<16x1xi32> to vector<16x128xi32>
    %89 = arith.cmpi eq, %87, %88 : vector<16x128xi32>
    %90 = vector.broadcast %80 : vector<16x1xi32> to vector<16x128xi32>
    %91 = arith.cmpi eq, %87, %90 : vector<16x128xi32>
    %92 = arith.ori %89, %91 : vector<16x128xi1>
    %cst_28 = arith.constant 0.000000e+00 : f32
    %93 = vector.broadcast %cst_28 : f32 to vector<16x128xf32>
    %94 = arith.select %92, %7, %93 : vector<16x128xi1>, vector<16x128xf32>
    %cst_29 = arith.constant dense<0.000000e+00> : vector<16xf32>
    %95 = vector.multi_reduction <add>, %94, %cst_29 [1] : vector<16x128xf32> to vector<16xf32>
    %96 = vector.shape_cast %95 : vector<16xf32> to vector<16x1xf32>
    %97 = arith.addf %22, %81 : vector<16x1xf32>
    %98 = arith.subf %97, %96 : vector<16x1xf32>
    %cst_30 = arith.constant 0.000000e+00 : f32
    %99 = vector.broadcast %cst_30 : f32 to vector<16x1xf32>
    %100 = arith.select %86, %98, %99 : vector<16x1xi1>, vector<16x1xf32>
    %c0_31 = arith.constant 0 : index
    %c0_32 = arith.constant 0 : index
    %101 = vector.load %arg6[%c0_31, %c0_32] : memref<16x1xf32, #tpu.memory_space<vmem>>, vector<16x1xf32>
    tpu.vector_store %arg6[%c0_31, %c0_32], %100 {strides = array<i32>} : memref<16x1xf32, #tpu.memory_space<vmem>>, vector<16x1xf32>,
    return
  }
  func.func @transform_0(%arg0: i32) -> (i32, i32) {
    %c0_i32 = arith.constant 0 : i32
    %c0_i32_0 = arith.constant 0 : i32
    return %arg0, %c0_i32 : i32, i32
  }
  func.func @transform_1(%arg0: i32) -> (i32, i32) {
    %c0_i32 = arith.constant 0 : i32
    %c0_i32_0 = arith.constant 0 : i32
    return %arg0, %c0_i32 : i32, i32
  }
  func.func @transform_2(%arg0: i32) -> (i32, i32) {
    %c0_i32 = arith.constant 0 : i32
    %c0_i32_0 = arith.constant 0 : i32
    %c0_i32_1 = arith.constant 0 : i32
    return %c0_i32, %c0_i32_0 : i32, i32
  }
  func.func @transform_3(%arg0: i32) -> (i32, i32) {
    %c0_i32 = arith.constant 0 : i32
    %c0_i32_0 = arith.constant 0 : i32
    %c0_i32_1 = arith.constant 0 : i32
    return %c0_i32, %c0_i32_0 : i32, i32
  }
  func.func @transform_4(%arg0: i32) -> (i32, i32) {
    %c0_i32 = arith.constant 0 : i32
    %c0_i32_0 = arith.constant 0 : i32
    %c0_i32_1 = arith.constant 0 : i32
    return %c0_i32, %c0_i32_0 : i32, i32
  }
  func.func @transform_5(%arg0: i32) -> (i32, i32) {
    %c0_i32 = arith.constant 0 : i32
    %c0_i32_0 = arith.constant 0 : i32
    return %arg0, %c0_i32 : i32, i32
  }
}

</mosaic_0001>

<llo_original>
// kernel: tpu_custom_call.1
$region0: #{tpu_custom_call.1}
  #allocation0 [shape = 'u32[]', space=smem, size = 0x4, offset = 0x4, fixed_abs, tag = 'smem constant byte address 0x4 - core index']
  #allocation1 [shape = 'u32[144,128]{1,0:T(1,128)}', space=vmem, size = 0x12000, scoped, tag = 'internal scratch']
  %s0 = inlined_call_operand.vmem [shape: bf16[32,32], index: 0, kind: input, shape index: {}]
  %s1 = inlined_call_operand.vmem [shape: s32[32,1], index: 1, kind: input, shape index: {}]
  %s2 = inlined_call_operand.vmem [shape: bf16[32,128], index: 2, kind: input, shape index: {}]
  %s3 = inlined_call_operand.vmem [shape: f32[1,128], index: 3, kind: input, shape index: {}]
  %s4 = inlined_call_operand.vmem [shape: s32[1,128], index: 4, kind: input, shape index: {}]
  %s5 = inlined_call_operand.vmem [shape: f32[32,1], index: 5, kind: output, shape index: {}]
  %s6 = sld [smem:[#allocation0]]
  $region53: #{tpu_custom_call.1} parent=0
    _
  %s8 = ssub.s32 1, %s6
  %s9 = scalar_select 0, %s8, %s6
  loop: start=0, step=1, limit=4
  $region2: #{tpu_custom_call.1} parent=0 // loop_pre_header
    _
  $region3: #{tpu_custom_call.1} parent=0 // loop_header
    %s11 = sphi 0, %s15
    %p12 = scmp.ge.s32.totalorder %s11, 4
    %s21 = sphi 0, %s23
    %s24 = sphi 0, %s21
    %s25 = sphi 0, %s24
    %s41 = sphi 0, %s25
    %s47 = sphi 0, %s49
    %s50 = sphi 0, %s47
    %s51 = sphi 0, %s50
    %s67 = sphi 0, %s51
    %s71 = sphi 0, %s71
    %s73 = sphi 0, %s71
    %s74 = sphi 0, %s73
    %s88 = sphi 0, %s74
    %s92 = sphi 0, %s92
    %s94 = sphi 0, %s92
    %s95 = sphi 0, %s94
    %s109 = sphi 0, %s95
    %s113 = sphi 0, %s113
    %s115 = sphi 0, %s113
    %s116 = sphi 0, %s115
    %s130 = sphi 0, %s116
    %s136 = sphi 0, %s138
    %s139 = sphi 0, %s136
    %s140 = sphi 0, %s139
    %s156 = sphi 0, %s140
  $region4: #{tpu_custom_call.1} parent=0 // loop_header_branch
    %14 = sbr.rel (%p12) target = $region8
  $region5: #{tpu_custom_call.1} parent=0 // loop_body
    %s16 = ssub.s32 %s11, 1
    %s17 = ssub.s32 %s11, 2
    %s18 = sadd.s32 %s11, 1
    %s19 = ssub.s32 %s11, %s18
    %p20 = scmp.eq.s32.totalorder %s19, 0
    %s22 = sadd.s32 %s21, 1
    %s23 = scalar_select %p20, %s21, %s22
    %p26 = pneg %p20
    %p27 = scmp.eq.s32.totalorder %s11, 1
    %p28 = por %p26, %p27
    %p29 = scmp.ne.s32.totalorder %s21, %s24
    %p30 = scmp.eq.s32.totalorder %s11, 0
    %p31 = por %p29, %p30
    %p32 = scmp.ne.s32.totalorder %s21, %s24
    %p33 = scmp.eq.s32.totalorder %s16, 1
    %p34 = por %p32, %p33
    %p35 = scmp.ne.s32.totalorder %s24, %s25
    %p36 = scmp.eq.s32.totalorder %s16, 0
    %p37 = por %p35, %p36
    %p38 = scmp.ne.s32.totalorder %s24, %s25
    %p39 = scmp.eq.s32.totalorder %s17, 1
    %p40 = por %p38, %p39
    %p42 = scmp.ne.s32.totalorder %s25, %s41
    %p43 = scmp.eq.s32.totalorder %s17, 0
    %p44 = por %p42, %p43
    %s45 = ssub.s32 %s11, %s18
    %p46 = scmp.eq.s32.totalorder %s45, 0
    %s48 = sadd.s32 %s47, 1
    %s49 = scalar_select %p46, %s47, %s48
    %p52 = pneg %p46
    %p53 = scmp.eq.s32.totalorder %s11, 1
    %p54 = por %p52, %p53
    %p55 = scmp.ne.s32.totalorder %s47, %s50
    %p56 = scmp.eq.s32.totalorder %s11, 0
    %p57 = por %p55, %p56
    %p58 = scmp.ne.s32.totalorder %s47, %s50
    %p59 = scmp.eq.s32.totalorder %s16, 1
    %p60 = por %p58, %p59
    %p61 = scmp.ne.s32.totalorder %s50, %s51
    %p62 = scmp.eq.s32.totalorder %s16, 0
    %p63 = por %p61, %p62
    %p64 = scmp.ne.s32.totalorder %s50, %s51
    %p65 = scmp.eq.s32.totalorder %s17, 1
    %p66 = por %p64, %p65
    %p68 = scmp.ne.s32.totalorder %s51, %s67
    %p69 = scmp.eq.s32.totalorder %s17, 0
    %p70 = por %p68, %p69
    %s72 = sadd.s32 %s71, 1
    %p75 = scmp.eq.s32.totalorder %s11, 1
    %p76 = scmp.ne.s32.totalorder %s71, %s73
    %p77 = scmp.eq.s32.totalorder %s11, 0
    %p78 = por %p76, %p77
    %p79 = scmp.ne.s32.totalorder %s71, %s73
    %p80 = scmp.eq.s32.totalorder %s16, 1
    %p81 = por %p79, %p80
    %p82 = scmp.ne.s32.totalorder %s73, %s74
    %p83 = scmp.eq.s32.totalorder %s16, 0
    %p84 = por %p82, %p83
    %p85 = scmp.ne.s32.totalorder %s73, %s74
    %p86 = scmp.eq.s32.totalorder %s17, 1
    %p87 = por %p85, %p86
    %p89 = scmp.ne.s32.totalorder %s74, %s88
    %p90 = scmp.eq.s32.totalorder %s17, 0
    %p91 = por %p89, %p90
    %s93 = sadd.s32 %s92, 1
    %p96 = scmp.eq.s32.totalorder %s11, 1
    %p97 = scmp.ne.s32.totalorder %s92, %s94
    %p98 = scmp.eq.s32.totalorder %s11, 0
    %p99 = por %p97, %p98
    %p100 = scmp.ne.s32.totalorder %s92, %s94
    %p101 = scmp.eq.s32.totalorder %s16, 1
    %p102 = por %p100, %p101
    %p103 = scmp.ne.s32.totalorder %s94, %s95
    %p104 = scmp.eq.s32.totalorder %s16, 0
    %p105 = por %p103, %p104
    %p106 = scmp.ne.s32.totalorder %s94, %s95
    %p107 = scmp.eq.s32.totalorder %s17, 1
    %p108 = por %p106, %p107
    %p110 = scmp.ne.s32.totalorder %s95, %s109
    %p111 = scmp.eq.s32.totalorder %s17, 0
    %p112 = por %p110, %p111
    %s114 = sadd.s32 %s113, 1
    %p117 = scmp.eq.s32.totalorder %s11, 1
    %p118 = scmp.ne.s32.totalorder %s113, %s115
    %p119 = scmp.eq.s32.totalorder %s11, 0
    %p120 = por %p118, %p119
    %p121 = scmp.ne.s32.totalorder %s113, %s115
    %p122 = scmp.eq.s32.totalorder %s16, 1
    %p123 = por %p121, %p122
    %p124 = scmp.ne.s32.totalorder %s115, %s116
    %p125 = scmp.eq.s32.totalorder %s16, 0
    %p126 = por %p124, %p125
    %p127 = scmp.ne.s32.totalorder %s115, %s116
    %p128 = scmp.eq.s32.totalorder %s17, 1
    %p129 = por %p127, %p128
    %p131 = scmp.ne.s32.totalorder %s116, %s130
    %p132 = scmp.eq.s32.totalorder %s17, 0
    %p133 = por %p131, %p132
    %s134 = ssub.s32 %s11, %s18
    %p135 = scmp.eq.s32.totalorder %s134, 0
    %s137 = sadd.s32 %s136, 1
    %s138 = scalar_select %p135, %s136, %s137
    %p141 = pneg %p135
    %p142 = scmp.eq.s32.totalorder %s11, 1
    %p143 = por %p141, %p142
    %p144 = scmp.ne.s32.totalorder %s136, %s139
    %p145 = scmp.eq.s32.totalorder %s11, 0
    %p146 = por %p144, %p145
    %p147 = scmp.ne.s32.totalorder %s136, %s139
    %p148 = scmp.eq.s32.totalorder %s16, 1
    %p149 = por %p147, %p148
    %p150 = scmp.ne.s32.totalorder %s139, %s140
    %p151 = scmp.eq.s32.totalorder %s16, 0
    %p152 = por %p150, %p151
    %p153 = scmp.ne.s32.totalorder %s139, %s140
    %p154 = scmp.eq.s32.totalorder %s17, 1
    %p155 = por %p153, %p154
    %p157 = scmp.ne.s32.totalorder %s140, %s156
    %p158 = scmp.eq.s32.totalorder %s17, 0
    %p159 = por %p157, %p158
    %p160 = scmp.le.s32.totalorder 1, %s11
    %p161 = scmp.lt.s32.totalorder %s11, 3
    %p162 = pnand %p160, %p161
    %p163 = pneg %p162
    // Predicated region
    $region9: #{tpu_custom_call.1} parent=5 // pred_check
      _
    $region10: #{tpu_custom_call.1} parent=5 // pred_check_branch
      %165 = sbr.rel (%p162) target = $region12
    $region11: #{tpu_custom_call.1} parent=5 // pred_region
      %s166 = ssub.s32 %s11, 1
      // Predicated region
      $region13: #{tpu_custom_call.1} parent=11 // pred_check
        %p167 = pneg %p84
      $region14: #{tpu_custom_call.1} parent=11 // pred_check_branch
        %169 = sbr.rel (%p167) target = $region16
      $region15: #{tpu_custom_call.1} parent=11 // pred_region
        _
      $region16: #{tpu_custom_call.1} parent=11 // pred_fallthru
        _
      // Predicated region
      $region17: #{tpu_custom_call.1} parent=11 // pred_check
        %p170 = pneg %p105
      $region18: #{tpu_custom_call.1} parent=11 // pred_check_branch
        %172 = sbr.rel (%p170) target = $region20
      $region19: #{tpu_custom_call.1} parent=11 // pred_region
        _
      $region20: #{tpu_custom_call.1} parent=11 // pred_fallthru
        _
      // Predicated region
      $region21: #{tpu_custom_call.1} parent=11 // pred_check
        %p173 = pneg %p126
      $region22: #{tpu_custom_call.1} parent=11 // pred_check_branch
        %175 = sbr.rel (%p173) target = $region24
      $region23: #{tpu_custom_call.1} parent=11 // pred_region
        _
      $region24: #{tpu_custom_call.1} parent=11 // pred_fallthru
        _
    $region12: #{tpu_custom_call.1} parent=5 // pred_fallthru
      _
    %p176 = scmp.lt.s32.totalorder %s11, 2
    // Predicated region
    $region25: #{tpu_custom_call.1} parent=5 // pred_check
      %p177 = pneg %p176
    $region26: #{tpu_custom_call.1} parent=5 // pred_check_branch
      %179 = sbr.rel (%p177) target = $region28
    $region27: #{tpu_custom_call.1} parent=5 // pred_region
      // Predicated region
      $region29: #{tpu_custom_call.1} parent=27 // pred_check
        %p180 = pneg %p31
      $region30: #{tpu_custom_call.1} parent=27 // pred_check_branch
        %182 = sbr.rel (%p180) target = $region32
      $region31: #{tpu_custom_call.1} parent=27 // pred_region
        %s183 = smul.u32 2, %s11
        %p184 = scmp.lt.s32.totalorder %s183, 3
        %s185 = scalar_select %p184, %s183, 3
        %s186 = smul.addr %s185, 4
        %s187 = scalar_lea.vmem %s0, %s186
        %s188 = smul.u32 2, %s11
      $region32: #{tpu_custom_call.1} parent=27 // pred_fallthru
        _
      // Predicated region
      $region33: #{tpu_custom_call.1} parent=27 // pred_check
        %p189 = pneg %p57
      $region34: #{tpu_custom_call.1} parent=27 // pred_check_branch
        %191 = sbr.rel (%p189) target = $region36
      $region35: #{tpu_custom_call.1} parent=27 // pred_region
        %s192 = smul.u32 2, %s11
        %p193 = scmp.lt.s32.totalorder %s192, 3
        %s194 = scalar_select %p193, %s192, 3
        %s195 = smul.addr %s194, 8
        %s196 = scalar_lea.vmem %s1, %s195
        %s197 = smul.u32 2, %s11
      $region36: #{tpu_custom_call.1} parent=27 // pred_fallthru
        _
    $region28: #{tpu_custom_call.1} parent=5 // pred_fallthru
      _
    %p198 = scmp.le.s32.totalorder 1, %s11
    %p199 = scmp.lt.s32.totalorder %s11, 3
    %p200 = pnand %p198, %p199
    %p201 = pneg %p200
    // Predicated region
    $region37: #{tpu_custom_call.1} parent=5 // pred_check
      _
    $region38: #{tpu_custom_call.1} parent=5 // pred_check_branch
      %203 = sbr.rel (%p200) target = $region40
    $region39: #{tpu_custom_call.1} parent=5 // pred_region
      %s204 = ssub.s32 %s11, 1
      %s205 = smul.u32 2, %s16
      %p206 = scmp.lt.s32.totalorder %s205, 3
      %s207 = scalar_select %p206, %s205, 3
      %s208 = smul.addr %s207, 4
      %s209 = scalar_lea.vmem %s0, %s208
      %p210 = pneg %p37
      %p211 = pneg %p34
      %s212 = smul.u32 2, %s16
      %p213 = scmp.lt.s32.totalorder %s212, 3
      %s214 = scalar_select %p213, %s212, 3
      %s215 = smul.addr %s214, 8
      %s216 = scalar_lea.vmem %s1, %s215
      %p217 = pneg %p63
      %p218 = pneg %p60
      %p219 = pneg %p84
      %p220 = pneg %p81
      %p221 = pneg %p105
      %p222 = pneg %p102
      %p223 = pneg %p126
      %p224 = pneg %p123
      %p225 = pneg %p152
      %p226 = pneg %p149
      %s227 = smul.u32 2, %s16
      %p228 = scmp.lt.s32.totalorder %s227, 3
      %s229 = scalar_select %p228, %s227, 3
      %s230 = smul.addr %s229, 8
      %s231 = scalar_lea.vmem %s5, %s230
      %s232 = smul.u32 2, %s16
      %p233 = scmp.lt.s32.totalorder %s232, 3
      %s234 = scalar_select %p233, %s232, 3
      %s235 = smul.addr %s234, 4
      %s236 = scalar_lea.vmem %s0, %s235
      %s237 = smul.u32 2, %s16
      %s238 = smul.u32 2, %s16
      %p239 = scmp.lt.s32.totalorder %s238, 3
      %s240 = scalar_select %p239, %s238, 3
      %s241 = smul.addr %s240, 8
      %s242 = scalar_lea.vmem %s1, %s241
      %s243 = smul.u32 2, %s16
      %s244 = smul.u32 2, %s16
      %p245 = scmp.lt.s32.totalorder %s244, 3
      %s246 = scalar_select %p245, %s244, 3
      %s247 = smul.addr %s246, 8
      %s248 = scalar_lea.vmem %s5, %s247
      %s249 = smul.u32 2, %s16
      %v251 = vld [vmem:[%s236] sm:$0xf]
      %v252 = vld [vmem:[%s236 + $0x4] sm:$0xf]
      %v253 = vld [vmem:[%s242] sm:$0xff]
      %v254 = vld [vmem:[%s242 + $0x8] sm:$0xff]
      %v255 = vld [vmem:[%s4] sm:$0x1]
      %v256 = vld [vmem:[%s2] sm:$0xf]
      %v257 = vld [vmem:[%s2 + $0x4] sm:$0xf]
      %v258 = vld [vmem:[%s2 + $0x8] sm:$0xf]
      %v259 = vld [vmem:[%s2 + $0xc] sm:$0xf]
      %v260 = vld [vmem:[%s3] sm:$0x1]
      %v262 = vlaneseq
      %v263 = vshrl.u32 %v262, 7
      %v264 = vsub.s32 0, %v263
      %v265 = vrot.slane %v260, %v264
      %v269 = vunpack.c.l.b16 %v251
      %v270 = vunpack.c.l.b16 %v252
      %v271 = vpack.c.b16 %v270, %v269
      %v276 = vunpack.c.l.b16 %v256
      %v277 = vunpack.c.l.b16 %v257
      %v278 = vunpack.c.l.b16 %v258
      %v279 = vunpack.c.l.b16 %v259
      %v280 = vpack.c.b16 %v277, %v276
      %v281 = vpack.c.b16 %v279, %v278
      %vm284 = vcmask 261120
      %v286 = vsel %vm284, %v271, 0
      %288 = vmatprep.subr.bf16.mxu0 0
      %289 = vmatpush1.bf16.msra.mxu0 %v280
      %290 = vmatprep.subr.bf16.mxu0 0
      %291 = vmatpush1.bf16.msra.mxu0 %v281
      %292 = vmatprep.subr.bf16.mxu0 0
      %293 = vmatpush1.bf16.msra.mxu0 0
      %294 = vmatprep.subr.bf16.mxu0 0
      %295 = vmatpush1.bf16.msra.mxu0 0
      %296 = vmatprep.subr.bf16.mxu0 0
      %297 = vmatpush1.bf16.msra.mxu0 0
      %298 = vmatprep.subr.bf16.mxu0 0
      %299 = vmatpush1.bf16.msra.mxu0 0
      %300 = vmatprep.subr.bf16.mxu0 0
      %301 = vmatpush1.bf16.msra.mxu0 0
      %302 = vmatprep.subr.bf16.mxu0 0
      %303 = vmatpush1.bf16.msra.mxu0 0
      %304 = vmatprep.subr.bf16.mxu0 0
      %305 = vmatpush1.bf16.msra.mxu0 0
      %306 = vmatprep.subr.bf16.mxu0 0
      %307 = vmatpush1.bf16.msra.mxu0 0
      %308 = vmatprep.subr.bf16.mxu0 0
      %309 = vmatpush1.bf16.msra.mxu0 0
      %310 = vmatprep.subr.bf16.mxu0 0
      %311 = vmatpush1.bf16.msra.mxu0 0
      %312 = vmatprep.subr.bf16.mxu0 0
      %313 = vmatpush1.bf16.msra.mxu0 0
      %314 = vmatprep.subr.bf16.mxu0 0
      %315 = vmatpush1.bf16.msra.mxu0 0
      %316 = vmatprep.subr.bf16.mxu0 0
      %317 = vmatpush1.bf16.msra.mxu0 0
      %318 = vmatprep.subr.bf16.mxu0 0
      %319 = vmatpush1.bf16.msra.mxu0 0
      %320 = vmatprep.mubr.bf16.mxu0 0
      %321 = vmatmul.mubr.bf16.gmra.mrb[0].mxu0 %v286
      %v322 = vpop.f32.mrb[0].mxu0
      %v323 = vadd.f32 %v265, %v322
      %v324 = vpop.f32.mrb[0].mxu0
      %v325 = vpop.f32.mrb[0].mxu0
      %v326 = vadd.f32 %v265, %v325
      %v327 = vpop.f32.mrb[0].mxu0
      %328 = vdwg.mxu0
      %329 = vmax.xlane.f32.xlu0 %v323
      %v330 = vpop.xlane.xlu0 %329
      %331 = vmax.xlane.f32.xlu0 %v326
      %v332 = vpop.xlane.xlu0 %331
      %v333 = vsub.f32 %v323, %v330
      %v334 = vsub.f32 %v326, %v332
      %v335 = vmul.f32 %v333, 1.442695
      %v336 = vpow.pop %v335
      %v337 = vmul.f32 %v334, 1.442695
      %v338 = vpow.pop %v337
      %vm339 = vcmp.eq.s32.totalorder %v255, 0
      %v340 = vsel %vm339, 1, 0
      %v341 = vlaneseq
      %v342 = vshrl.u32 %v341, 7
      %v343 = vsub.s32 0, %v342
      %v344 = vrot.slane %v340, %v343
      %vm345 = vcmp.eq.s32.totalorder %v344, 1
      %v346 = vsel %vm345, %v336, 0.0
      %v347 = vsel %vm345, %v338, 0.0
      %348 = vadd.xlane.f32.xlu0 %v346
      %v349 = vpop.xlane.xlu0 %348
      %350 = vadd.xlane.f32.xlu0 %v347
      %v351 = vpop.xlane.xlu0 %350
      %v352 = vlog2.pop %v349
      %v353 = vmul.f32 %v352, 0.6931472
      %v354 = vlog2.pop %v351
      %v355 = vmul.f32 %v354, 0.6931472
      %v356 = vadd.f32 %v330, %v353
      %v357 = vadd.f32 %v332, %v355
      %vm358 = vcmp.eq.s32.totalorder %v255, 1
      %v359 = vsel %vm358, 1, 0
      %v360 = vlaneseq
      %v361 = vshrl.u32 %v360, 7
      %v362 = vsub.s32 0, %v361
      %v363 = vrot.slane %v359, %v362
      %vm364 = vcmp.eq.s32.totalorder %v363, 1
      %v365 = vsel %vm364, %v336, 0.0
      %v366 = vsel %vm364, %v338, 0.0
      %367 = vadd.xlane.f32.xlu0 %v365
      %v368 = vpop.xlane.xlu0 %367
      %369 = vadd.xlane.f32.xlu0 %v366
      %v370 = vpop.xlane.xlu0 %369
      %v371 = vlog2.pop %v368
      %v372 = vmul.f32 %v371, 0.6931472
      %v373 = vlog2.pop %v370
      %v374 = vmul.f32 %v373, 0.6931472
      %v375 = vadd.f32 %v330, %v372
      %v376 = vadd.f32 %v332, %v374
      %vm377 = vcmp.eq.s32.totalorder %v255, 2
      %v378 = vsel %vm377, 1, 0
      %v379 = vlaneseq
      %v380 = vshrl.u32 %v379, 7
      %v381 = vsub.s32 0, %v380
      %v382 = vrot.slane %v378, %v381
      %vm383 = vcmp.eq.s32.totalorder %v382, 1
      %v384 = vsel %vm383, %v336, 0.0
      %v385 = vsel %vm383, %v338, 0.0
      %386 = vadd.xlane.f32.xlu0 %v384
      %v387 = vpop.xlane.xlu0 %386
      %388 = vadd.xlane.f32.xlu0 %v385
      %v389 = vpop.xlane.xlu0 %388
      %v390 = vlog2.pop %v387
      %v391 = vmul.f32 %v390, 0.6931472
      %v392 = vlog2.pop %v389
      %v393 = vmul.f32 %v392, 0.6931472
      %v394 = vadd.f32 %v330, %v391
      %v395 = vadd.f32 %v332, %v393
      %vm396 = vcmp.ge.s32.totalorder %v253, 0
      %vm397 = vcmp.ge.s32.totalorder %v254, 0
      %vm398 = vcmp.lt.s32.totalorder %v253, 8
      %vm399 = vcmp.lt.s32.totalorder %v254, 8
      %vm400 = vmand %vm396, %vm398
      %vm401 = vmand %vm397, %vm399
      %v402 = vsel %vm400, %v253, 4294967295
      %v403 = vsel %vm401, %v254, 4294967295
      %vm404 = vcmp.ge.s32.totalorder %v253, 8
      %vm405 = vcmp.ge.s32.totalorder %v254, 8
      %vm406 = vcmp.lt.s32.totalorder %v253, 16
      %vm407 = vcmp.lt.s32.totalorder %v254, 16
      %vm408 = vmand %vm404, %vm406
      %vm409 = vmand %vm405, %vm407
      %v410 = vsub.s32 %v253, 8
      %v411 = vsub.s32 %v254, 8
      %v412 = vadd.s32 %v410, 10
      %v413 = vadd.s32 %v411, 10
      %v414 = vsel %vm408, %v412, %v402
      %v415 = vsel %vm409, %v413, %v403
      %v416 = vsel %vm408, 9, 4294967295
      %v417 = vsel %vm409, 9, 4294967295
      %v418 = vsel %vm408, %v375, 0.0
      %v419 = vsel %vm409, %v376, 0.0
      %vm420 = vcmp.ge.s32.totalorder %v253, 16
      %vm421 = vcmp.ge.s32.totalorder %v254, 16
      %vm422 = vcmp.lt.s32.totalorder %v253, 24
      %vm423 = vcmp.lt.s32.totalorder %v254, 24
      %vm424 = vmand %vm420, %vm422
      %vm425 = vmand %vm421, %vm423
      %v426 = vsub.s32 %v253, 16
      %v427 = vsub.s32 %v254, 16
      %v428 = vadd.s32 %v426, 18
      %v429 = vadd.s32 %v427, 18
      %v430 = vsel %vm424, %v428, %v414
      %v431 = vsel %vm425, %v429, %v415
      %v432 = vsel %vm424, 8, %v416
      %v433 = vsel %vm425, 8, %v417
      %v434 = vsel %vm424, %v394, %v418
      %v435 = vsel %vm425, %v395, %v419
      %vm436 = vmand %vm396, %vm422
      %vm437 = vmand %vm397, %vm423
      %v438 = vlaneseq
      %v439 = vand.u32 %v438, 127
      %440 = vset.pattern.permute.xlu0 0
      %441 = vperm.xlu0 %440, %v430
      %v442 = vpop.permute.xlu0 %441
      %443 = vset.pattern.permute.xlu0 0
      %444 = vperm.xlu0 %443, %v431
      %v445 = vpop.permute.xlu0 %444
      %vm446 = vcmp.eq.s32.totalorder %v439, %v442
      %vm447 = vcmp.eq.s32.totalorder %v439, %v445
      %448 = vset.pattern.permute.xlu0 0
      %449 = vperm.xlu0 %448, %v432
      %v450 = vpop.permute.xlu0 %449
      %451 = vset.pattern.permute.xlu0 0
      %452 = vperm.xlu0 %451, %v433
      %v453 = vpop.permute.xlu0 %452
      %vm454 = vcmp.eq.s32.totalorder %v439, %v450
      %vm455 = vcmp.eq.s32.totalorder %v439, %v453
      %vm456 = vmor %vm446, %vm454
      %vm457 = vmor %vm447, %vm455
      %v458 = vsel %vm456, %v323, 0.0
      %v459 = vsel %vm457, %v326, 0.0
      %460 = vadd.xlane.f32.xlu0 %v458
      %v461 = vpop.xlane.xlu0 %460
      %462 = vadd.xlane.f32.xlu0 %v459
      %v463 = vpop.xlane.xlu0 %462
      %v464 = vadd.f32 %v356, %v434
      %v465 = vadd.f32 %v357, %v435
      %v466 = vsub.f32 %v464, %v461
      %v467 = vsub.f32 %v465, %v463
      %v468 = vsel %vm436, %v466, 0.0
      %v469 = vsel %vm437, %v467, 0.0
      %vm470 = vcmask 7168
      %471 = vst.msk [vmem:[%s248] sm:$0xff] %vm470, %v468
      %472 = vst.msk [vmem:[%s248 + $0x8] sm:$0xff] %vm470, %v469
      %s473 = smul.u32 2, %s16
      %p474 = scmp.lt.s32.totalorder %s473, 3
      %s475 = scalar_select %p474, %s473, 3
      %s476 = smul.addr %s475, 8
      %s477 = scalar_lea.vmem %s5, %s476
      // Predicated region
      $region41: #{tpu_custom_call.1} parent=39 // pred_check
        %p478 = pneg %p149
      $region42: #{tpu_custom_call.1} parent=39 // pred_check_branch
        %480 = sbr.rel (%p478) target = $region44
      $region43: #{tpu_custom_call.1} parent=39 // pred_region
        %s481 = smul.u32 2, %s16
      $region44: #{tpu_custom_call.1} parent=39 // pred_fallthru
        _
    $region40: #{tpu_custom_call.1} parent=5 // pred_fallthru
      _
    %p482 = scmp.le.s32.totalorder 2, %s11
    // Predicated region
    $region45: #{tpu_custom_call.1} parent=5 // pred_check
      %p483 = pneg %p482
    $region46: #{tpu_custom_call.1} parent=5 // pred_check_branch
      %485 = sbr.rel (%p483) target = $region48
    $region47: #{tpu_custom_call.1} parent=5 // pred_region
      %s486 = ssub.s32 %s11, 2
      // Predicated region
      $region49: #{tpu_custom_call.1} parent=47 // pred_check
        %p487 = pneg %p155
      $region50: #{tpu_custom_call.1} parent=47 // pred_check_branch
        %489 = sbr.rel (%p487) target = $region52
      $region51: #{tpu_custom_call.1} parent=47 // pred_region
        %s490 = smul.u32 2, %s17
        %p491 = scmp.lt.s32.totalorder %s490, 3
        %s492 = scalar_select %p491, %s490, 3
        %s493 = smul.addr %s492, 8
        %s494 = scalar_lea.vmem %s5, %s493
      $region52: #{tpu_custom_call.1} parent=47 // pred_fallthru
        _
    $region48: #{tpu_custom_call.1} parent=5 // pred_fallthru
      _
  $region6: #{tpu_custom_call.1} parent=0 // loop_footer
    %s15 = sadd.s32 1, %s11
  $region7: #{tpu_custom_call.1} parent=0 // loop_footer_branch
    %10 = sbr.rel target = $region3
  $region8: #{tpu_custom_call.1} parent=0 // loop_exit
    _

</llo_original>
